<compile_context>
chip_gen: v7x
topology: tpu7x:2x2x1
jax: 0.10.0
libtpu: 0.0.40
codegen_flags: <defaults>
</compile_context>

<pallas_src>
import jax
import jax.numpy as jnp
from jax.experimental import pallas as pl
from jax.experimental.pallas import tpu as pltpu


def _embed_kernel(x_ref, w_ref, pos_ref, o_ref):
    # x_ref:   (S, K) bf16  per-batch flattened patches; row 0 is all-zero (cls slot)
    # w_ref:   (K, E) bf16  flattened conv weight (resident across the grid)
    # pos_ref: (S, E) bf16  row 0 = cls_token + pos[0]; rows 1: = pos[1:] + conv bias
    # o_ref:   (S, E) bf16  output tokens (row 0 = cls row) — single aligned store
    acc = jnp.dot(x_ref[...], w_ref[...], preferred_element_type=jnp.float32)
    o_ref[...] = (acc + pos_ref[...].astype(jnp.float32)).astype(o_ref.dtype)


def _build_call(B, S, K, E, out_dtype, single_buffer_resident):
    resident_kwargs = (
        dict(pipeline_mode=pl.Buffered(1)) if single_buffer_resident else {}
    )
    itemsize_out = jnp.dtype(out_dtype).itemsize
    cost = pl.CostEstimate(
        flops=2 * B * S * K * E,
        transcendentals=0,
        bytes_accessed=(B * S * K * 2) + (K * E * 2) + (S * E * 2)
        + (B * S * E * itemsize_out),
    )
    return pl.pallas_call(
        _embed_kernel,
        out_shape=jax.ShapeDtypeStruct((B, S, E), out_dtype),
        grid_spec=pltpu.PrefetchScalarGridSpec(
            num_scalar_prefetch=0,
            grid=(B,),
            in_specs=[
                pl.BlockSpec((None, S, K), lambda b: (b, 0, 0)),  # per-batch patches
                pl.BlockSpec((K, E), lambda b: (0, 0), **resident_kwargs),  # weight
                pl.BlockSpec((S, E), lambda b: (0, 0), **resident_kwargs),  # pos table
            ],
            out_specs=pl.BlockSpec((None, S, E), lambda b: (b, 0, 0)),
        ),
        compiler_params=pltpu.CompilerParams(
            dimension_semantics=("parallel",),
            vmem_limit_bytes=32 * 1024 * 1024,
        ),
        cost_estimate=cost,
    )


def patch_embed(patches_padded, w2d, pos_table, out_dtype=jnp.bfloat16):
    """patches_padded: (B, N+1, K) bf16 (row 0 of each batch is zero);
    w2d: (K, E) bf16; pos_table: (N+1, E) bf16  ->  (B, N+1, E) out_dtype."""
    B, S, K = patches_padded.shape
    E = w2d.shape[1]
    try:
        return _build_call(B, S, K, E, out_dtype, True)(
            patches_padded, w2d, pos_table)
    except Exception:
        # pipeline_mode=pl.Buffered(1) not supported by this JAX build: fall back
        # to the default (double-buffered) resident operands.
        return _build_call(B, S, K, E, out_dtype, False)(
            patches_padded, w2d, pos_table)


class EmbeddingPallas:
    def __init__(self, in_channels, patch_size, emb_size, img_size, key):
        self.patch_size = patch_size
        self.emb_size = emb_size
        n_patches = (img_size // patch_size) ** 2
        k1, k2, k3, k4 = jax.random.split(key, 4)
        # Conv2d weight: (E, C, P, P), bias: (E,)  (deterministic synthetic init)
        self.conv_w = jax.random.normal(
            k1, (emb_size, in_channels, patch_size, patch_size), jnp.float32) * 0.02
        self.conv_b = jax.random.normal(k2, (emb_size,), jnp.float32) * 0.02
        self.cls_token = jax.random.normal(k3, (1, 1, emb_size), jnp.float32)
        self.positions = jax.random.normal(k4, (n_patches + 1, emb_size), jnp.float32)

    def __call__(self, x, out_dtype=jnp.bfloat16):
        # x: NCHW (B, C, H, W), matching the PyTorch module's input convention.
        B, C, H, W = x.shape
        P = self.patch_size
        E = self.emb_size
        Hp, Wp = H // P, W // P
        N = Hp * Wp
        K = C * P * P

        # Patchify glue (XLA): (B,C,H,W) -> (B, N, C*P*P) in (C,P,P) feature order,
        # prepend one zero row per batch (the "cls patch" slot) and cast to bf16.
        # Pad + cast fuse with the transpose so the intermediate hits HBM once, bf16.
        patches = x.reshape(B, C, Hp, P, Wp, P)
        patches = patches.transpose(0, 2, 4, 1, 3, 5)          # (B, Hp, Wp, C, P, P)
        patches = patches.reshape(B, N, K)
        patches = jnp.pad(patches, ((0, 0), (1, 0), (0, 0)))   # (B, N+1, K), row0 = 0
        patches = patches.astype(jnp.bfloat16)

        # Flatten conv weight to (K, E) so conv == patches @ w2d; bf16 MXU operands.
        w2d = self.conv_w.reshape(E, K).T.astype(jnp.bfloat16)  # (K, E)

        # Positional table (bf16) with cls row and conv bias pre-fused:
        #   row 0  = cls_token + positions[0]   (no conv bias; its matmul row is 0)
        #   row 1: = positions[1:] + conv_b
        pos_table = jnp.concatenate(
            [self.cls_token[0] + self.positions[0:1],
             self.positions[1:] + self.conv_b[None, :]],
            axis=0,
        ).astype(jnp.bfloat16)                                  # (N+1, E)

        # Matmul + positional add all inside the Pallas kernel -> (B, N+1, E).
        return patch_embed(patches, w2d, pos_table, out_dtype=out_dtype)


def _reference(mod, x):
    """Pure-JAX f32 reference of the PyTorch forward for verification."""
    B, C, H, W = x.shape
    P = mod.patch_size
    E = mod.emb_size
    Hp, Wp = H // P, W // P
    patches = (x.reshape(B, C, Hp, P, Wp, P)
                 .transpose(0, 2, 4, 1, 3, 5)
                 .reshape(B, Hp * Wp, C * P * P))
    tok = patches @ mod.conv_w.reshape(E, -1).T + mod.conv_b
    cls = jnp.broadcast_to(mod.cls_token, (B, 1, E))
    out = jnp.concatenate([cls, tok], axis=1)
    return out + mod.positions[None, :, :]


if __name__ == "__main__":
    key = jax.random.PRNGKey(0)
    k_x, k_p = jax.random.split(key)

    B, C, H, W = 2, 4, 16, 16
    patch_size, emb_size = 4, 32

    x = jax.random.normal(k_x, (B, C, H, W), jnp.float32)

    mod = EmbeddingPallas(in_channels=C, patch_size=patch_size,
                          emb_size=emb_size, img_size=H, key=k_p)

    out = jax.block_until_ready(mod(x))
    ref = _reference(mod, x)

    assert out.shape == (B, (H // patch_size) ** 2 + 1, emb_size), out.shape
    assert out.dtype == jnp.bfloat16, out.dtype
    # bf16 operands / bf16 pos table / bf16 output (f32 MXU accumulation) ->
    # loosened tolerance vs the f32 reference.
    err = float(jnp.max(jnp.abs(out.astype(jnp.float32) - ref)))
    assert jnp.allclose(out.astype(jnp.float32), ref, atol=5e-2, rtol=5e-2), err

    print("KERNEL_OK")
</pallas_src>

<mosaic_0001>
module attributes {stable_mosaic.version = 11 : i64} {
  func.func @_embed_kernel(%arg0: i32, %arg1: memref<1x17x64xbf16, #tpu.memory_space<vmem>>, %arg2: memref<64x32xbf16, #tpu.memory_space<vmem>>, %arg3: memref<17x32xbf16, #tpu.memory_space<vmem>>, %arg4: memref<1x17x32xbf16, #tpu.memory_space<vmem>>) attributes {dimension_semantics = [#tpu.dimension_semantics<parallel>], iteration_bounds = array<i64: 2>, scalar_prefetch = 0 : i64, scratch_operands = 0 : i64, tpu.core_type = #tpu.core_type<tc>, window_params = [{transform_indices = @transform_0, window_bounds = array<i64: 1, 17, 64>}, {pipeline_mode = #tpu.pipeline_mode<synchronous>, transform_indices = @transform_1, window_bounds = array<i64: 64, 32>}, {pipeline_mode = #tpu.pipeline_mode<synchronous>, transform_indices = @transform_2, window_bounds = array<i64: 17, 32>}, {transform_indices = @transform_3, window_bounds = array<i64: 1, 17, 32>}]} {
    %c0 = arith.constant 0 : index
    %c0_0 = arith.constant 0 : index
    %c0_1 = arith.constant 0 : index
    %0 = vector.load %arg1[%c0, %c0_0, %c0_1] : memref<1x17x64xbf16, #tpu.memory_space<vmem>>, vector<1x17x64xbf16>
    %1 = vector.shape_cast %0 : vector<1x17x64xbf16> to vector<17x64xbf16>
    %c0_2 = arith.constant 0 : index
    %c0_3 = arith.constant 0 : index
    %2 = vector.load %arg2[%c0_2, %c0_3] : memref<64x32xbf16, #tpu.memory_space<vmem>>, vector<64x32xbf16>
    %cst = arith.constant dense<0.000000e+00> : vector<17x32xf32>
    %3 = tpu.matmul %1, %2, %cst {dimension_numbers = #tpu.dot_dimension_numbers<[1], [0], [0], [1], [0, 0, 1, 1], [], []>} : vector<17x64xbf16>, vector<64x32xbf16>, vector<17x32xf32> -> vector<17x32xf32>
    %c0_4 = arith.constant 0 : index
    %c0_5 = arith.constant 0 : index
    %4 = vector.load %arg3[%c0_4, %c0_5] : memref<17x32xbf16, #tpu.memory_space<vmem>>, vector<17x32xbf16>
    %5 = arith.extf %4 : vector<17x32xbf16> to vector<17x32xf32>
    %6 = arith.addf %3, %5 : vector<17x32xf32>
    %7 = arith.truncf %6 : vector<17x32xf32> to vector<17x32xbf16>
    %c0_6 = arith.constant 0 : index
    %c0_7 = arith.constant 0 : index
    %c0_8 = arith.constant 0 : index
    %8 = vector.load %arg4[%c0_6, %c0_7, %c0_8] : memref<1x17x32xbf16, #tpu.memory_space<vmem>>, vector<1x17x32xbf16>
    %9 = vector.shape_cast %8 : vector<1x17x32xbf16> to vector<17x32xbf16>
    %10 = vector.shape_cast %7 : vector<17x32xbf16> to vector<1x17x32xbf16>
    tpu.vector_store %arg4[%c0_6, %c0_7, %c0_8], %10 {strides = array<i32>} : memref<1x17x32xbf16, #tpu.memory_space<vmem>>, vector<1x17x32xbf16>,
    return
  }
  func.func @transform_0(%arg0: i32) -> (i32, i32, i32) {
    %c0_i32 = arith.constant 0 : i32
    %c0_i32_0 = arith.constant 0 : i32
    %c0_i32_1 = arith.constant 0 : i32
    return %arg0, %c0_i32, %c0_i32_0 : i32, i32, i32
  }
  func.func @transform_1(%arg0: i32) -> (i32, i32) {
    %c0_i32 = arith.constant 0 : i32
    %c0_i32_0 = arith.constant 0 : i32
    %c0_i32_1 = arith.constant 0 : i32
    return %c0_i32, %c0_i32_0 : i32, i32
  }
  func.func @transform_2(%arg0: i32) -> (i32, i32) {
    %c0_i32 = arith.constant 0 : i32
    %c0_i32_0 = arith.constant 0 : i32
    %c0_i32_1 = arith.constant 0 : i32
    return %c0_i32, %c0_i32_0 : i32, i32
  }
  func.func @transform_3(%arg0: i32) -> (i32, i32, i32) {
    %c0_i32 = arith.constant 0 : i32
    %c0_i32_0 = arith.constant 0 : i32
    %c0_i32_1 = arith.constant 0 : i32
    return %arg0, %c0_i32, %c0_i32_0 : i32, i32, i32
  }
}

module attributes {stable_mosaic.version = 11 : i64} {
  func.func @_embed_kernel(%arg0: i32, %arg1: memref<1x17x64xbf16, #tpu.memory_space<vmem>>, %arg2: memref<64x32xbf16, #tpu.memory_space<vmem>>, %arg3: memref<17x32xbf16, #tpu.memory_space<vmem>>, %arg4: memref<1x17x32xbf16, #tpu.memory_space<vmem>>) attributes {dimension_semantics = [#tpu.dimension_semantics<parallel>], iteration_bounds = array<i64: 2>, scalar_prefetch = 0 : i64, scratch_operands = 0 : i64, tpu.core_type = #tpu.core_type<tc>, window_params = [{transform_indices = @transform_0, window_bounds = array<i64: 1, 17, 64>}, {pipeline_mode = #tpu.pipeline_mode<synchronous>, transform_indices = @transform_1, window_bounds = array<i64: 64, 32>}, {pipeline_mode = #tpu.pipeline_mode<synchronous>, transform_indices = @transform_2, window_bounds = array<i64: 17, 32>}, {transform_indices = @transform_3, window_bounds = array<i64: 1, 17, 32>}]} {
    %c0 = arith.constant 0 : index
    %c0_0 = arith.constant 0 : index
    %c0_1 = arith.constant 0 : index
    %0 = vector.load %arg1[%c0, %c0_0, %c0_1] : memref<1x17x64xbf16, #tpu.memory_space<vmem>>, vector<1x17x64xbf16>
    %1 = vector.shape_cast %0 : vector<1x17x64xbf16> to vector<17x64xbf16>
    %c0_2 = arith.constant 0 : index
    %c0_3 = arith.constant 0 : index
    %2 = vector.load %arg2[%c0_2, %c0_3] : memref<64x32xbf16, #tpu.memory_space<vmem>>, vector<64x32xbf16>
    %cst = arith.constant dense<0.000000e+00> : vector<17x32xf32>
    %3 = tpu.matmul %1, %2, %cst {dimension_numbers = #tpu.dot_dimension_numbers<[1], [0], [0], [1], [0, 0, 1, 1], [], []>} : vector<17x64xbf16>, vector<64x32xbf16>, vector<17x32xf32> -> vector<17x32xf32>
    %c0_4 = arith.constant 0 : index
    %c0_5 = arith.constant 0 : index
    %4 = vector.load %arg3[%c0_4, %c0_5] : memref<17x32xbf16, #tpu.memory_space<vmem>>, vector<17x32xbf16>
    %5 = arith.extf %4 : vector<17x32xbf16> to vector<17x32xf32>
    %6 = arith.addf %3, %5 : vector<17x32xf32>
    %7 = arith.truncf %6 : vector<17x32xf32> to vector<17x32xbf16>
    %c0_6 = arith.constant 0 : index
    %c0_7 = arith.constant 0 : index
    %c0_8 = arith.constant 0 : index
    %8 = vector.load %arg4[%c0_6, %c0_7, %c0_8] : memref<1x17x32xbf16, #tpu.memory_space<vmem>>, vector<1x17x32xbf16>
    %9 = vector.shape_cast %8 : vector<1x17x32xbf16> to vector<17x32xbf16>
    %10 = vector.shape_cast %7 : vector<17x32xbf16> to vector<1x17x32xbf16>
    tpu.vector_store %arg4[%c0_6, %c0_7, %c0_8], %10 {strides = array<i32>} : memref<1x17x32xbf16, #tpu.memory_space<vmem>>, vector<1x17x32xbf16>,
    return
  }
  func.func @transform_0(%arg0: i32) -> (i32, i32, i32) {
    %c0_i32 = arith.constant 0 : i32
    %c0_i32_0 = arith.constant 0 : i32
    %c0_i32_1 = arith.constant 0 : i32
    return %arg0, %c0_i32, %c0_i32_0 : i32, i32, i32
  }
  func.func @transform_1(%arg0: i32) -> (i32, i32) {
    %c0_i32 = arith.constant 0 : i32
    %c0_i32_0 = arith.constant 0 : i32
    %c0_i32_1 = arith.constant 0 : i32
    return %c0_i32, %c0_i32_0 : i32, i32
  }
  func.func @transform_2(%arg0: i32) -> (i32, i32) {
    %c0_i32 = arith.constant 0 : i32
    %c0_i32_0 = arith.constant 0 : i32
    %c0_i32_1 = arith.constant 0 : i32
    return %c0_i32, %c0_i32_0 : i32, i32
  }
  func.func @transform_3(%arg0: i32) -> (i32, i32, i32) {
    %c0_i32 = arith.constant 0 : i32
    %c0_i32_0 = arith.constant 0 : i32
    %c0_i32_1 = arith.constant 0 : i32
    return %arg0, %c0_i32, %c0_i32_0 : i32, i32, i32
  }
}

</mosaic_0001>

<llo_original>
// kernel: tpu_custom_call.1
$region0: #{tpu_custom_call.1}
  #allocation0 [shape = 'u32[]', space=smem, size = 0x4, offset = 0x4, fixed_abs, tag = 'smem constant byte address 0x4 - core index']
  #allocation1 [shape = 'u32[144,128]{1,0:T(1,128)}', space=vmem, size = 0x12000, scoped, tag = 'internal scratch']
  %s0 = inlined_call_operand.vmem [shape: bf16[2,17,64], index: 0, kind: input, shape index: {}]
  %s1 = inlined_call_operand.vmem [shape: bf16[64,32], index: 1, kind: input, shape index: {}]
  %s2 = inlined_call_operand.vmem [shape: bf16[17,32], index: 2, kind: input, shape index: {}]
  %s3 = inlined_call_operand.vmem [shape: bf16[2,17,32], index: 3, kind: output, shape index: {}]
  %s4 = sld [smem:[#allocation0]]
  $region45: #{tpu_custom_call.1} parent=0
    _
  %s6 = ssub.s32 1, %s4
  %s7 = scalar_select 0, %s6, %s4
  loop: start=0, step=1, limit=4
  $region2: #{tpu_custom_call.1} parent=0 // loop_pre_header
    _
  $region3: #{tpu_custom_call.1} parent=0 // loop_header
    %s9 = sphi 0, %s13
    %p10 = scmp.ge.s32.totalorder %s9, 4
    %s19 = sphi 0, %s21
    %s22 = sphi 0, %s19
    %s23 = sphi 0, %s22
    %s39 = sphi 0, %s23
    %s43 = sphi 0, %s43
    %s45 = sphi 0, %s43
    %s46 = sphi 0, %s45
    %s60 = sphi 0, %s46
    %s64 = sphi 0, %s64
    %s66 = sphi 0, %s64
    %s67 = sphi 0, %s66
    %s81 = sphi 0, %s67
    %s87 = sphi 0, %s89
    %s90 = sphi 0, %s87
    %s91 = sphi 0, %s90
    %s107 = sphi 0, %s91
  $region4: #{tpu_custom_call.1} parent=0 // loop_header_branch
    %12 = sbr.rel (%p10) target = $region8
  $region5: #{tpu_custom_call.1} parent=0 // loop_body
    %s14 = ssub.s32 %s9, 1
    %s15 = ssub.s32 %s9, 2
    %s16 = sadd.s32 %s9, 1
    %s17 = ssub.s32 %s9, %s16
    %p18 = scmp.eq.s32.totalorder %s17, 0
    %s20 = sadd.s32 %s19, 1
    %s21 = scalar_select %p18, %s19, %s20
    %p24 = pneg %p18
    %p25 = scmp.eq.s32.totalorder %s9, 1
    %p26 = por %p24, %p25
    %p27 = scmp.ne.s32.totalorder %s19, %s22
    %p28 = scmp.eq.s32.totalorder %s9, 0
    %p29 = por %p27, %p28
    %p30 = scmp.ne.s32.totalorder %s19, %s22
    %p31 = scmp.eq.s32.totalorder %s14, 1
    %p32 = por %p30, %p31
    %p33 = scmp.ne.s32.totalorder %s22, %s23
    %p34 = scmp.eq.s32.totalorder %s14, 0
    %p35 = por %p33, %p34
    %p36 = scmp.ne.s32.totalorder %s22, %s23
    %p37 = scmp.eq.s32.totalorder %s15, 1
    %p38 = por %p36, %p37
    %p40 = scmp.ne.s32.totalorder %s23, %s39
    %p41 = scmp.eq.s32.totalorder %s15, 0
    %p42 = por %p40, %p41
    %s44 = sadd.s32 %s43, 1
    %p47 = scmp.eq.s32.totalorder %s9, 1
    %p48 = scmp.ne.s32.totalorder %s43, %s45
    %p49 = scmp.eq.s32.totalorder %s9, 0
    %p50 = por %p48, %p49
    %p51 = scmp.ne.s32.totalorder %s43, %s45
    %p52 = scmp.eq.s32.totalorder %s14, 1
    %p53 = por %p51, %p52
    %p54 = scmp.ne.s32.totalorder %s45, %s46
    %p55 = scmp.eq.s32.totalorder %s14, 0
    %p56 = por %p54, %p55
    %p57 = scmp.ne.s32.totalorder %s45, %s46
    %p58 = scmp.eq.s32.totalorder %s15, 1
    %p59 = por %p57, %p58
    %p61 = scmp.ne.s32.totalorder %s46, %s60
    %p62 = scmp.eq.s32.totalorder %s15, 0
    %p63 = por %p61, %p62
    %s65 = sadd.s32 %s64, 1
    %p68 = scmp.eq.s32.totalorder %s9, 1
    %p69 = scmp.ne.s32.totalorder %s64, %s66
    %p70 = scmp.eq.s32.totalorder %s9, 0
    %p71 = por %p69, %p70
    %p72 = scmp.ne.s32.totalorder %s64, %s66
    %p73 = scmp.eq.s32.totalorder %s14, 1
    %p74 = por %p72, %p73
    %p75 = scmp.ne.s32.totalorder %s66, %s67
    %p76 = scmp.eq.s32.totalorder %s14, 0
    %p77 = por %p75, %p76
    %p78 = scmp.ne.s32.totalorder %s66, %s67
    %p79 = scmp.eq.s32.totalorder %s15, 1
    %p80 = por %p78, %p79
    %p82 = scmp.ne.s32.totalorder %s67, %s81
    %p83 = scmp.eq.s32.totalorder %s15, 0
    %p84 = por %p82, %p83
    %s85 = ssub.s32 %s9, %s16
    %p86 = scmp.eq.s32.totalorder %s85, 0
    %s88 = sadd.s32 %s87, 1
    %s89 = scalar_select %p86, %s87, %s88
    %p92 = pneg %p86
    %p93 = scmp.eq.s32.totalorder %s9, 1
    %p94 = por %p92, %p93
    %p95 = scmp.ne.s32.totalorder %s87, %s90
    %p96 = scmp.eq.s32.totalorder %s9, 0
    %p97 = por %p95, %p96
    %p98 = scmp.ne.s32.totalorder %s87, %s90
    %p99 = scmp.eq.s32.totalorder %s14, 1
    %p100 = por %p98, %p99
    %p101 = scmp.ne.s32.totalorder %s90, %s91
    %p102 = scmp.eq.s32.totalorder %s14, 0
    %p103 = por %p101, %p102
    %p104 = scmp.ne.s32.totalorder %s90, %s91
    %p105 = scmp.eq.s32.totalorder %s15, 1
    %p106 = por %p104, %p105
    %p108 = scmp.ne.s32.totalorder %s91, %s107
    %p109 = scmp.eq.s32.totalorder %s15, 0
    %p110 = por %p108, %p109
    %p111 = scmp.le.s32.totalorder 1, %s9
    %p112 = scmp.lt.s32.totalorder %s9, 3
    %p113 = pnand %p111, %p112
    %p114 = pneg %p113
    // Predicated region
    $region9: #{tpu_custom_call.1} parent=5 // pred_check
      _
    $region10: #{tpu_custom_call.1} parent=5 // pred_check_branch
      %116 = sbr.rel (%p113) target = $region12
    $region11: #{tpu_custom_call.1} parent=5 // pred_region
      %s117 = ssub.s32 %s9, 1
      // Predicated region
      $region13: #{tpu_custom_call.1} parent=11 // pred_check
        %p118 = pneg %p56
      $region14: #{tpu_custom_call.1} parent=11 // pred_check_branch
        %120 = sbr.rel (%p118) target = $region16
      $region15: #{tpu_custom_call.1} parent=11 // pred_region
        _
      $region16: #{tpu_custom_call.1} parent=11 // pred_fallthru
        _
      // Predicated region
      $region17: #{tpu_custom_call.1} parent=11 // pred_check
        %p121 = pneg %p77
      $region18: #{tpu_custom_call.1} parent=11 // pred_check_branch
        %123 = sbr.rel (%p121) target = $region20
      $region19: #{tpu_custom_call.1} parent=11 // pred_region
        _
      $region20: #{tpu_custom_call.1} parent=11 // pred_fallthru
        _
    $region12: #{tpu_custom_call.1} parent=5 // pred_fallthru
      _
    %p124 = scmp.lt.s32.totalorder %s9, 2
    // Predicated region
    $region21: #{tpu_custom_call.1} parent=5 // pred_check
      %p125 = pneg %p124
    $region22: #{tpu_custom_call.1} parent=5 // pred_check_branch
      %127 = sbr.rel (%p125) target = $region24
    $region23: #{tpu_custom_call.1} parent=5 // pred_region
      // Predicated region
      $region25: #{tpu_custom_call.1} parent=23 // pred_check
        %p128 = pneg %p29
      $region26: #{tpu_custom_call.1} parent=23 // pred_check_branch
        %130 = sbr.rel (%p128) target = $region28
      $region27: #{tpu_custom_call.1} parent=23 // pred_region
        %p131 = scmp.lt.s32.totalorder %s9, 1
        %s132 = scalar_select %p131, %s9, 1
        %s133 = smul.addr %s132, 3
        %s134 = smul.addr %s133, 4
        %s135 = scalar_lea.vmem %s0, %s134
      $region28: #{tpu_custom_call.1} parent=23 // pred_fallthru
        _
    $region24: #{tpu_custom_call.1} parent=5 // pred_fallthru
      _
    %p136 = scmp.le.s32.totalorder 1, %s9
    %p137 = scmp.lt.s32.totalorder %s9, 3
    %p138 = pnand %p136, %p137
    %p139 = pneg %p138
    // Predicated region
    $region29: #{tpu_custom_call.1} parent=5 // pred_check
      _
    $region30: #{tpu_custom_call.1} parent=5 // pred_check_branch
      %141 = sbr.rel (%p138) target = $region32
    $region31: #{tpu_custom_call.1} parent=5 // pred_region
      %s142 = ssub.s32 %s9, 1
      %p143 = scmp.lt.s32.totalorder %s14, 1
      %s144 = scalar_select %p143, %s14, 1
      %s145 = smul.addr %s144, 3
      %s146 = smul.addr %s145, 4
      %s147 = scalar_lea.vmem %s0, %s146
      %p148 = pneg %p35
      %p149 = pneg %p32
      %p150 = pneg %p56
      %p151 = pneg %p53
      %p152 = pneg %p77
      %p153 = pneg %p74
      %p154 = pneg %p103
      %p155 = pneg %p100
      %p156 = scmp.lt.s32.totalorder %s14, 1
      %s157 = scalar_select %p156, %s14, 1
      %s158 = smul.addr %s157, 3
      %s159 = smul.addr %s158, 4
      %s160 = scalar_lea.vmem %s3, %s159
      %p161 = scmp.lt.s32.totalorder %s14, 1
      %s162 = scalar_select %p161, %s14, 1
      %s163 = smul.addr %s162, 3
      %s164 = smul.addr %s163, 4
      %s165 = scalar_lea.vmem %s0, %s164
      %p166 = scmp.lt.s32.totalorder %s14, 1
      %s167 = scalar_select %p166, %s14, 1
      %s168 = smul.addr %s167, 3
      %s169 = smul.addr %s168, 4
      %s170 = scalar_lea.vmem %s3, %s169
      %v172 = vld [vmem:[%s165] sm:$0xf]
      %v173 = vld [vmem:[%s165 + $0x4] sm:$0xf]
      %v174 = vld [vmem:[%s165 + $0x8] sm:$0x1]
      %v175 = vld [vmem:[%s1] sm:$0xf]
      %v176 = vld [vmem:[%s1 + $0x4] sm:$0xf]
      %v177 = vld [vmem:[%s1 + $0x8] sm:$0xf]
      %v178 = vld [vmem:[%s1 + $0xc] sm:$0xf]
      %v179 = vld [vmem:[%s1 + $0x10] sm:$0xf]
      %v180 = vld [vmem:[%s1 + $0x14] sm:$0xf]
      %v181 = vld [vmem:[%s1 + $0x18] sm:$0xf]
      %v182 = vld [vmem:[%s1 + $0x1c] sm:$0xf]
      %v183 = vld [vmem:[%s2] sm:$0xf]
      %v184 = vld [vmem:[%s2 + $0x4] sm:$0xf]
      %v185 = vld [vmem:[%s2 + $0x8] sm:$0x1]
      %v186 = vunpack.c.l.bf16 %v183
      %v187 = vunpack.c.l.bf16 %v184
      %v188 = vunpack.c.l.bf16 %v185
      %v192 = vunpack.c.l.b16 %v172
      %v193 = vunpack.c.l.b16 %v173
      %v194 = vunpack.c.l.b16 %v174
      %v195 = vpack.c.b16 %v193, %v192
      %v196 = vpack.c.b16 %v194, %v194
      %v205 = vunpack.c.l.b16 %v175
      %v206 = vunpack.c.l.b16 %v176
      %v207 = vunpack.c.l.b16 %v177
      %v208 = vunpack.c.l.b16 %v178
      %v209 = vunpack.c.l.b16 %v179
      %v210 = vunpack.c.l.b16 %v180
      %v211 = vunpack.c.l.b16 %v181
      %v212 = vunpack.c.l.b16 %v182
      %v213 = vpack.c.b16 %v206, %v205
      %v214 = vpack.c.b16 %v208, %v207
      %v215 = vpack.c.b16 %v210, %v209
      %v216 = vpack.c.b16 %v212, %v211
      %vm221 = vcmask 523264
      %v223 = vsel %vm221, %v195, 0
      %v226 = vsel %vm221, %v196, 0
      %228 = vmatprep.subr.bf16.mxu0 0
      %229 = vmatpush1.bf16.msra.mxu0 %v213
      %230 = vmatprep.subr.bf16.mxu0 0
      %231 = vmatpush1.bf16.msra.mxu0 %v214
      %232 = vmatprep.subr.bf16.mxu0 0
      %233 = vmatpush1.bf16.msra.mxu0 %v215
      %234 = vmatprep.subr.bf16.mxu0 0
      %235 = vmatpush1.bf16.msra.mxu0 %v216
      %236 = vmatprep.subr.bf16.mxu0 0
      %237 = vmatpush1.bf16.msra.mxu0 0
      %238 = vmatprep.subr.bf16.mxu0 0
      %239 = vmatpush1.bf16.msra.mxu0 0
      %240 = vmatprep.subr.bf16.mxu0 0
      %241 = vmatpush1.bf16.msra.mxu0 0
      %242 = vmatprep.subr.bf16.mxu0 0
      %243 = vmatpush1.bf16.msra.mxu0 0
      %244 = vmatprep.subr.bf16.mxu0 0
      %245 = vmatpush1.bf16.msra.mxu0 0
      %246 = vmatprep.subr.bf16.mxu0 0
      %247 = vmatpush1.bf16.msra.mxu0 0
      %248 = vmatprep.subr.bf16.mxu0 0
      %249 = vmatpush1.bf16.msra.mxu0 0
      %250 = vmatprep.subr.bf16.mxu0 0
      %251 = vmatpush1.bf16.msra.mxu0 0
      %252 = vmatprep.subr.bf16.mxu0 0
      %253 = vmatpush1.bf16.msra.mxu0 0
      %254 = vmatprep.subr.bf16.mxu0 0
      %255 = vmatpush1.bf16.msra.mxu0 0
      %256 = vmatprep.subr.bf16.mxu0 0
      %257 = vmatpush1.bf16.msra.mxu0 0
      %258 = vmatprep.subr.bf16.mxu0 0
      %259 = vmatpush1.bf16.msra.mxu0 0
      %260 = vmatprep.mubr.bf16.mxu0 0
      %261 = vmatmul.mubr.bf16.gmra.mrb[0].mxu0 %v223
      %v262 = vpop.f32.mrb[0].mxu0
      %v263 = vadd.f32 %v186, %v262
      %v264 = vpop.f32.mrb[0].mxu0
      %v265 = vpop.f32.mrb[0].mxu0
      %v266 = vadd.f32 %v187, %v265
      %v267 = vpop.f32.mrb[0].mxu0
      %268 = vmatprep.mubr.bf16.mxu0 0
      %269 = vmatmul.mubr.bf16.gmra.mrb[0].mxu0 %v226
      %v270 = vpop.f32.mrb[0].mxu0
      %v271 = vadd.f32 %v188, %v270
      %v272 = vpop.f32.mrb[0].mxu0
      %v273 = vpop.f32.mrb[0].mxu0
      %v274 = vpop.f32.mrb[0].mxu0
      %275 = vdwg.mxu0
      %v276 = vpack.c.bf16 %v266, %v263
      %v277 = vpack.c.bf16 %v271, %v271
      %v280 = vunpack.c.l.b16 %v276
      %v281 = vunpack.c.h.b16 %v276
      %v282 = vunpack.c.l.b16 %v277
      %v283 = vpack.c.b16 %v280, %v280
      %v284 = vpack.c.b16 %v281, %v281
      %v285 = vpack.c.b16 %v282, %v282
      %vm289 = vcmask 257024
      %290 = vst.msk [vmem:[%s170] sm:$0xf] %vm289, %v283
      %291 = vst.msk [vmem:[%s170 + $0x4] sm:$0xf] %vm289, %v284
      %vm292 = vcmask 253952
      %vm293 = vsmask.f32 256
      %vm294 = vmand %vm292, %vm293
      %v295 = vld [vmem:[%s170 + $0x8] sm:$0x1]
      %v296 = vsel %vm294, %v285, %v295
      %297 = vst [vmem:[%s170 + $0x8] sm:$0x1] %v296
      %p298 = scmp.lt.s32.totalorder %s14, 1
      %s299 = scalar_select %p298, %s14, 1
      %s300 = smul.addr %s299, 3
      %s301 = smul.addr %s300, 4
      %s302 = scalar_lea.vmem %s3, %s301
      // Predicated region
      $region33: #{tpu_custom_call.1} parent=31 // pred_check
        %p303 = pneg %p100
      $region34: #{tpu_custom_call.1} parent=31 // pred_check_branch
        %305 = sbr.rel (%p303) target = $region36
      $region35: #{tpu_custom_call.1} parent=31 // pred_region
        _
      $region36: #{tpu_custom_call.1} parent=31 // pred_fallthru
        _
    $region32: #{tpu_custom_call.1} parent=5 // pred_fallthru
      _
    %p306 = scmp.le.s32.totalorder 2, %s9
    // Predicated region
    $region37: #{tpu_custom_call.1} parent=5 // pred_check
      %p307 = pneg %p306
    $region38: #{tpu_custom_call.1} parent=5 // pred_check_branch
      %309 = sbr.rel (%p307) target = $region40
    $region39: #{tpu_custom_call.1} parent=5 // pred_region
      %s310 = ssub.s32 %s9, 2
      // Predicated region
      $region41: #{tpu_custom_call.1} parent=39 // pred_check
        %p311 = pneg %p106
      $region42: #{tpu_custom_call.1} parent=39 // pred_check_branch
        %313 = sbr.rel (%p311) target = $region44
      $region43: #{tpu_custom_call.1} parent=39 // pred_region
        %p314 = scmp.lt.s32.totalorder %s15, 1
        %s315 = scalar_select %p314, %s15, 1
        %s316 = smul.addr %s315, 3
        %s317 = smul.addr %s316, 4
        %s318 = scalar_lea.vmem %s3, %s317
      $region44: #{tpu_custom_call.1} parent=39 // pred_fallthru
        _
    $region40: #{tpu_custom_call.1} parent=5 // pred_fallthru
      _
  $region6: #{tpu_custom_call.1} parent=0 // loop_footer
    %s13 = sadd.s32 1, %s9
  $region7: #{tpu_custom_call.1} parent=0 // loop_footer_branch
    %8 = sbr.rel target = $region3
  $region8: #{tpu_custom_call.1} parent=0 // loop_exit
    _

// kernel: tpu_custom_call.1
$region0: #{tpu_custom_call.1}
  #allocation0 [shape = 'u32[]', space=smem, size = 0x4, offset = 0x4, fixed_abs, tag = 'smem constant byte address 0x4 - core index']
  #allocation1 [shape = 'u32[144,128]{1,0:T(1,128)}', space=vmem, size = 0x12000, scoped, tag = 'internal scratch']
  %s0 = inlined_call_operand.vmem [shape: bf16[2,17,64], index: 0, kind: input, shape index: {}]
  %s1 = inlined_call_operand.vmem [shape: bf16[64,32], index: 1, kind: input, shape index: {}]
  %s2 = inlined_call_operand.vmem [shape: bf16[17,32], index: 2, kind: input, shape index: {}]
  %s3 = inlined_call_operand.vmem [shape: bf16[2,17,32], index: 3, kind: output, shape index: {}]
  %s4 = sld [smem:[#allocation0]]
  $region45: #{tpu_custom_call.1} parent=0
    _
  %s6 = ssub.s32 1, %s4
  %s7 = scalar_select 0, %s6, %s4
  loop: start=0, step=1, limit=4
  $region2: #{tpu_custom_call.1} parent=0 // loop_pre_header
    _
  $region3: #{tpu_custom_call.1} parent=0 // loop_header
    %s9 = sphi 0, %s13
    %p10 = scmp.ge.s32.totalorder %s9, 4
    %s19 = sphi 0, %s21
    %s22 = sphi 0, %s19
    %s23 = sphi 0, %s22
    %s39 = sphi 0, %s23
    %s43 = sphi 0, %s43
    %s45 = sphi 0, %s43
    %s46 = sphi 0, %s45
    %s60 = sphi 0, %s46
    %s64 = sphi 0, %s64
    %s66 = sphi 0, %s64
    %s67 = sphi 0, %s66
    %s81 = sphi 0, %s67
    %s87 = sphi 0, %s89
    %s90 = sphi 0, %s87
    %s91 = sphi 0, %s90
    %s107 = sphi 0, %s91
  $region4: #{tpu_custom_call.1} parent=0 // loop_header_branch
    %12 = sbr.rel (%p10) target = $region8
  $region5: #{tpu_custom_call.1} parent=0 // loop_body
    %s14 = ssub.s32 %s9, 1
    %s15 = ssub.s32 %s9, 2
    %s16 = sadd.s32 %s9, 1
    %s17 = ssub.s32 %s9, %s16
    %p18 = scmp.eq.s32.totalorder %s17, 0
    %s20 = sadd.s32 %s19, 1
    %s21 = scalar_select %p18, %s19, %s20
    %p24 = pneg %p18
    %p25 = scmp.eq.s32.totalorder %s9, 1
    %p26 = por %p24, %p25
    %p27 = scmp.ne.s32.totalorder %s19, %s22
    %p28 = scmp.eq.s32.totalorder %s9, 0
    %p29 = por %p27, %p28
    %p30 = scmp.ne.s32.totalorder %s19, %s22
    %p31 = scmp.eq.s32.totalorder %s14, 1
    %p32 = por %p30, %p31
    %p33 = scmp.ne.s32.totalorder %s22, %s23
    %p34 = scmp.eq.s32.totalorder %s14, 0
    %p35 = por %p33, %p34
    %p36 = scmp.ne.s32.totalorder %s22, %s23
    %p37 = scmp.eq.s32.totalorder %s15, 1
    %p38 = por %p36, %p37
    %p40 = scmp.ne.s32.totalorder %s23, %s39
    %p41 = scmp.eq.s32.totalorder %s15, 0
    %p42 = por %p40, %p41
    %s44 = sadd.s32 %s43, 1
    %p47 = scmp.eq.s32.totalorder %s9, 1
    %p48 = scmp.ne.s32.totalorder %s43, %s45
    %p49 = scmp.eq.s32.totalorder %s9, 0
    %p50 = por %p48, %p49
    %p51 = scmp.ne.s32.totalorder %s43, %s45
    %p52 = scmp.eq.s32.totalorder %s14, 1
    %p53 = por %p51, %p52
    %p54 = scmp.ne.s32.totalorder %s45, %s46
    %p55 = scmp.eq.s32.totalorder %s14, 0
    %p56 = por %p54, %p55
    %p57 = scmp.ne.s32.totalorder %s45, %s46
    %p58 = scmp.eq.s32.totalorder %s15, 1
    %p59 = por %p57, %p58
    %p61 = scmp.ne.s32.totalorder %s46, %s60
    %p62 = scmp.eq.s32.totalorder %s15, 0
    %p63 = por %p61, %p62
    %s65 = sadd.s32 %s64, 1
    %p68 = scmp.eq.s32.totalorder %s9, 1
    %p69 = scmp.ne.s32.totalorder %s64, %s66
    %p70 = scmp.eq.s32.totalorder %s9, 0
    %p71 = por %p69, %p70
    %p72 = scmp.ne.s32.totalorder %s64, %s66
    %p73 = scmp.eq.s32.totalorder %s14, 1
    %p74 = por %p72, %p73
    %p75 = scmp.ne.s32.totalorder %s66, %s67
    %p76 = scmp.eq.s32.totalorder %s14, 0
    %p77 = por %p75, %p76
    %p78 = scmp.ne.s32.totalorder %s66, %s67
    %p79 = scmp.eq.s32.totalorder %s15, 1
    %p80 = por %p78, %p79
    %p82 = scmp.ne.s32.totalorder %s67, %s81
    %p83 = scmp.eq.s32.totalorder %s15, 0
    %p84 = por %p82, %p83
    %s85 = ssub.s32 %s9, %s16
    %p86 = scmp.eq.s32.totalorder %s85, 0
    %s88 = sadd.s32 %s87, 1
    %s89 = scalar_select %p86, %s87, %s88
    %p92 = pneg %p86
    %p93 = scmp.eq.s32.totalorder %s9, 1
    %p94 = por %p92, %p93
    %p95 = scmp.ne.s32.totalorder %s87, %s90
    %p96 = scmp.eq.s32.totalorder %s9, 0
    %p97 = por %p95, %p96
    %p98 = scmp.ne.s32.totalorder %s87, %s90
    %p99 = scmp.eq.s32.totalorder %s14, 1
    %p100 = por %p98, %p99
    %p101 = scmp.ne.s32.totalorder %s90, %s91
    %p102 = scmp.eq.s32.totalorder %s14, 0
    %p103 = por %p101, %p102
    %p104 = scmp.ne.s32.totalorder %s90, %s91
    %p105 = scmp.eq.s32.totalorder %s15, 1
    %p106 = por %p104, %p105
    %p108 = scmp.ne.s32.totalorder %s91, %s107
    %p109 = scmp.eq.s32.totalorder %s15, 0
    %p110 = por %p108, %p109
    %p111 = scmp.le.s32.totalorder 1, %s9
    %p112 = scmp.lt.s32.totalorder %s9, 3
    %p113 = pnand %p111, %p112
    %p114 = pneg %p113
    // Predicated region
    $region9: #{tpu_custom_call.1} parent=5 // pred_check
      _
    $region10: #{tpu_custom_call.1} parent=5 // pred_check_branch
      %116 = sbr.rel (%p113) target = $region12
    $region11: #{tpu_custom_call.1} parent=5 // pred_region
      %s117 = ssub.s32 %s9, 1
      // Predicated region
      $region13: #{tpu_custom_call.1} parent=11 // pred_check
        %p118 = pneg %p56
      $region14: #{tpu_custom_call.1} parent=11 // pred_check_branch
        %120 = sbr.rel (%p118) target = $region16
      $region15: #{tpu_custom_call.1} parent=11 // pred_region
        _
      $region16: #{tpu_custom_call.1} parent=11 // pred_fallthru
        _
      // Predicated region
      $region17: #{tpu_custom_call.1} parent=11 // pred_check
        %p121 = pneg %p77
      $region18: #{tpu_custom_call.1} parent=11 // pred_check_branch
        %123 = sbr.rel (%p121) target = $region20
      $region19: #{tpu_custom_call.1} parent=11 // pred_region
        _
      $region20: #{tpu_custom_call.1} parent=11 // pred_fallthru
        _
    $region12: #{tpu_custom_call.1} parent=5 // pred_fallthru
      _
    %p124 = scmp.lt.s32.totalorder %s9, 2
    // Predicated region
    $region21: #{tpu_custom_call.1} parent=5 // pred_check
      %p125 = pneg %p124
    $region22: #{tpu_custom_call.1} parent=5 // pred_check_branch
      %127 = sbr.rel (%p125) target = $region24
    $region23: #{tpu_custom_call.1} parent=5 // pred_region
      // Predicated region
      $region25: #{tpu_custom_call.1} parent=23 // pred_check
        %p128 = pneg %p29
      $region26: #{tpu_custom_call.1} parent=23 // pred_check_branch
        %130 = sbr.rel (%p128) target = $region28
      $region27: #{tpu_custom_call.1} parent=23 // pred_region
        %p131 = scmp.lt.s32.totalorder %s9, 1
        %s132 = scalar_select %p131, %s9, 1
        %s133 = smul.addr %s132, 3
        %s134 = smul.addr %s133, 4
        %s135 = scalar_lea.vmem %s0, %s134
      $region28: #{tpu_custom_call.1} parent=23 // pred_fallthru
        _
    $region24: #{tpu_custom_call.1} parent=5 // pred_fallthru
      _
    %p136 = scmp.le.s32.totalorder 1, %s9
    %p137 = scmp.lt.s32.totalorder %s9, 3
    %p138 = pnand %p136, %p137
    %p139 = pneg %p138
    // Predicated region
    $region29: #{tpu_custom_call.1} parent=5 // pred_check
      _
    $region30: #{tpu_custom_call.1} parent=5 // pred_check_branch
      %141 = sbr.rel (%p138) target = $region32
    $region31: #{tpu_custom_call.1} parent=5 // pred_region
      %s142 = ssub.s32 %s9, 1
      %p143 = scmp.lt.s32.totalorder %s14, 1
      %s144 = scalar_select %p143, %s14, 1
      %s145 = smul.addr %s144, 3
      %s146 = smul.addr %s145, 4
      %s147 = scalar_lea.vmem %s0, %s146
      %p148 = pneg %p35
      %p149 = pneg %p32
      %p150 = pneg %p56
      %p151 = pneg %p53
      %p152 = pneg %p77
      %p153 = pneg %p74
      %p154 = pneg %p103
      %p155 = pneg %p100
      %p156 = scmp.lt.s32.totalorder %s14, 1
      %s157 = scalar_select %p156, %s14, 1
      %s158 = smul.addr %s157, 3
      %s159 = smul.addr %s158, 4
      %s160 = scalar_lea.vmem %s3, %s159
      %p161 = scmp.lt.s32.totalorder %s14, 1
      %s162 = scalar_select %p161, %s14, 1
      %s163 = smul.addr %s162, 3
      %s164 = smul.addr %s163, 4
      %s165 = scalar_lea.vmem %s0, %s164
      %p166 = scmp.lt.s32.totalorder %s14, 1
      %s167 = scalar_select %p166, %s14, 1
      %s168 = smul.addr %s167, 3
      %s169 = smul.addr %s168, 4
      %s170 = scalar_lea.vmem %s3, %s169
      %v172 = vld [vmem:[%s165] sm:$0xf]
      %v173 = vld [vmem:[%s165 + $0x4] sm:$0xf]
      %v174 = vld [vmem:[%s165 + $0x8] sm:$0x1]
      %v175 = vld [vmem:[%s1] sm:$0xf]
      %v176 = vld [vmem:[%s1 + $0x4] sm:$0xf]
      %v177 = vld [vmem:[%s1 + $0x8] sm:$0xf]
      %v178 = vld [vmem:[%s1 + $0xc] sm:$0xf]
      %v179 = vld [vmem:[%s1 + $0x10] sm:$0xf]
      %v180 = vld [vmem:[%s1 + $0x14] sm:$0xf]
      %v181 = vld [vmem:[%s1 + $0x18] sm:$0xf]
      %v182 = vld [vmem:[%s1 + $0x1c] sm:$0xf]
      %v183 = vld [vmem:[%s2] sm:$0xf]
      %v184 = vld [vmem:[%s2 + $0x4] sm:$0xf]
      %v185 = vld [vmem:[%s2 + $0x8] sm:$0x1]
      %v186 = vunpack.c.l.bf16 %v183
      %v187 = vunpack.c.l.bf16 %v184
      %v188 = vunpack.c.l.bf16 %v185
      %v192 = vunpack.c.l.b16 %v172
      %v193 = vunpack.c.l.b16 %v173
      %v194 = vunpack.c.l.b16 %v174
      %v195 = vpack.c.b16 %v193, %v192
      %v196 = vpack.c.b16 %v194, %v194
      %v205 = vunpack.c.l.b16 %v175
      %v206 = vunpack.c.l.b16 %v176
      %v207 = vunpack.c.l.b16 %v177
      %v208 = vunpack.c.l.b16 %v178
      %v209 = vunpack.c.l.b16 %v179
      %v210 = vunpack.c.l.b16 %v180
      %v211 = vunpack.c.l.b16 %v181
      %v212 = vunpack.c.l.b16 %v182
      %v213 = vpack.c.b16 %v206, %v205
      %v214 = vpack.c.b16 %v208, %v207
      %v215 = vpack.c.b16 %v210, %v209
      %v216 = vpack.c.b16 %v212, %v211
      %vm221 = vcmask 523264
      %v223 = vsel %vm221, %v195, 0
      %v226 = vsel %vm221, %v196, 0
      %228 = vmatprep.subr.bf16.mxu0 0
      %229 = vmatpush1.bf16.msra.mxu0 %v213
      %230 = vmatprep.subr.bf16.mxu0 0
      %231 = vmatpush1.bf16.msra.mxu0 %v214
      %232 = vmatprep.subr.bf16.mxu0 0
      %233 = vmatpush1.bf16.msra.mxu0 %v215
      %234 = vmatprep.subr.bf16.mxu0 0
      %235 = vmatpush1.bf16.msra.mxu0 %v216
      %236 = vmatprep.subr.bf16.mxu0 0
      %237 = vmatpush1.bf16.msra.mxu0 0
      %238 = vmatprep.subr.bf16.mxu0 0
      %239 = vmatpush1.bf16.msra.mxu0 0
      %240 = vmatprep.subr.bf16.mxu0 0
      %241 = vmatpush1.bf16.msra.mxu0 0
      %242 = vmatprep.subr.bf16.mxu0 0
      %243 = vmatpush1.bf16.msra.mxu0 0
      %244 = vmatprep.subr.bf16.mxu0 0
      %245 = vmatpush1.bf16.msra.mxu0 0
      %246 = vmatprep.subr.bf16.mxu0 0
      %247 = vmatpush1.bf16.msra.mxu0 0
      %248 = vmatprep.subr.bf16.mxu0 0
      %249 = vmatpush1.bf16.msra.mxu0 0
      %250 = vmatprep.subr.bf16.mxu0 0
      %251 = vmatpush1.bf16.msra.mxu0 0
      %252 = vmatprep.subr.bf16.mxu0 0
      %253 = vmatpush1.bf16.msra.mxu0 0
      %254 = vmatprep.subr.bf16.mxu0 0
      %255 = vmatpush1.bf16.msra.mxu0 0
      %256 = vmatprep.subr.bf16.mxu0 0
      %257 = vmatpush1.bf16.msra.mxu0 0
      %258 = vmatprep.subr.bf16.mxu0 0
      %259 = vmatpush1.bf16.msra.mxu0 0
      %260 = vmatprep.mubr.bf16.mxu0 0
      %261 = vmatmul.mubr.bf16.gmra.mrb[0].mxu0 %v223
      %v262 = vpop.f32.mrb[0].mxu0
      %v263 = vadd.f32 %v186, %v262
      %v264 = vpop.f32.mrb[0].mxu0
      %v265 = vpop.f32.mrb[0].mxu0
      %v266 = vadd.f32 %v187, %v265
      %v267 = vpop.f32.mrb[0].mxu0
      %268 = vmatprep.mubr.bf16.mxu0 0
      %269 = vmatmul.mubr.bf16.gmra.mrb[0].mxu0 %v226
      %v270 = vpop.f32.mrb[0].mxu0
      %v271 = vadd.f32 %v188, %v270
      %v272 = vpop.f32.mrb[0].mxu0
      %v273 = vpop.f32.mrb[0].mxu0
      %v274 = vpop.f32.mrb[0].mxu0
      %275 = vdwg.mxu0
      %v276 = vpack.c.bf16 %v266, %v263
      %v277 = vpack.c.bf16 %v271, %v271
      %v280 = vunpack.c.l.b16 %v276
      %v281 = vunpack.c.h.b16 %v276
      %v282 = vunpack.c.l.b16 %v277
      %v283 = vpack.c.b16 %v280, %v280
      %v284 = vpack.c.b16 %v281, %v281
      %v285 = vpack.c.b16 %v282, %v282
      %vm289 = vcmask 257024
      %290 = vst.msk [vmem:[%s170] sm:$0xf] %vm289, %v283
      %291 = vst.msk [vmem:[%s170 + $0x4] sm:$0xf] %vm289, %v284
      %vm292 = vcmask 253952
      %vm293 = vsmask.f32 256
      %vm294 = vmand %vm292, %vm293
      %v295 = vld [vmem:[%s170 + $0x8] sm:$0x1]
      %v296 = vsel %vm294, %v285, %v295
      %297 = vst [vmem:[%s170 + $0x8] sm:$0x1] %v296
      %p298 = scmp.lt.s32.totalorder %s14, 1
      %s299 = scalar_select %p298, %s14, 1
      %s300 = smul.addr %s299, 3
      %s301 = smul.addr %s300, 4
      %s302 = scalar_lea.vmem %s3, %s301
      // Predicated region
      $region33: #{tpu_custom_call.1} parent=31 // pred_check
        %p303 = pneg %p100
      $region34: #{tpu_custom_call.1} parent=31 // pred_check_branch
        %305 = sbr.rel (%p303) target = $region36
      $region35: #{tpu_custom_call.1} parent=31 // pred_region
        _
      $region36: #{tpu_custom_call.1} parent=31 // pred_fallthru
        _
    $region32: #{tpu_custom_call.1} parent=5 // pred_fallthru
      _
    %p306 = scmp.le.s32.totalorder 2, %s9
    // Predicated region
    $region37: #{tpu_custom_call.1} parent=5 // pred_check
      %p307 = pneg %p306
    $region38: #{tpu_custom_call.1} parent=5 // pred_check_branch
      %309 = sbr.rel (%p307) target = $region40
    $region39: #{tpu_custom_call.1} parent=5 // pred_region
      %s310 = ssub.s32 %s9, 2
      // Predicated region
      $region41: #{tpu_custom_call.1} parent=39 // pred_check
        %p311 = pneg %p106
      $region42: #{tpu_custom_call.1} parent=39 // pred_check_branch
        %313 = sbr.rel (%p311) target = $region44
      $region43: #{tpu_custom_call.1} parent=39 // pred_region
        %p314 = scmp.lt.s32.totalorder %s15, 1
        %s315 = scalar_select %p314, %s15, 1
        %s316 = smul.addr %s315, 3
        %s317 = smul.addr %s316, 4
        %s318 = scalar_lea.vmem %s3, %s317
      $region44: #{tpu_custom_call.1} parent=39 // pred_fallthru
        _
    $region40: #{tpu_custom_call.1} parent=5 // pred_fallthru
      _
  $region6: #{tpu_custom_call.1} parent=0 // loop_footer
    %s13 = sadd.s32 1, %s9
  $region7: #{tpu_custom_call.1} parent=0 // loop_footer_branch
    %8 = sbr.rel target = $region3
  $region8: #{tpu_custom_call.1} parent=0 // loop_exit
    _

</llo_original>
